<compile_context>
chip_gen: v7x
topology: tpu7x:2x2x1
jax: 0.10.0
libtpu: 0.0.40
codegen_flags: <defaults>
</compile_context>

<pallas_src>
import jax
import jax.numpy as jnp
from jax.experimental import pallas as pl
from jax.experimental.pallas import tpu as pltpu


def _round_up(x: int, m: int) -> int:
    return ((x + m - 1) // m) * m


# ---------------------------------------------------------------------------
# Fused MLP head kernel: sigmoid(relu(x @ W2 + b2) @ W3 + b3)
# ---------------------------------------------------------------------------
def _mlp_head_kernel(x_ref, w2_ref, b2_ref, w3_ref, b3_ref, o_ref):
    x = x_ref[...]                                          # [TILE_B, D0p]
    # linear2 on the MXU with f32 accumulation; bias + ReLU on the f32 accumulator.
    h = jnp.dot(x, w2_ref[...], preferred_element_type=jnp.float32)
    h = jnp.maximum(h + b2_ref[...], 0.0)                   # bias broadcast [1, D1p]
    # linear3 on the MXU with f32 accumulation; bias on the f32 accumulator.
    z = jnp.dot(h.astype(w3_ref.dtype), w3_ref[...],
                preferred_element_type=jnp.float32)
    z = z + b3_ref[...]
    # sigmoid(z) = 1 / (1 + exp(-z)); exp + approx reciprocal both ride the EUP slot.
    e = jnp.exp(-z)
    o_ref[...] = pl.reciprocal(1.0 + e, approx=True).astype(o_ref.dtype)


def _mlp_head(x, w2_t, b2, w3_t, b3):
    """sigmoid(relu(x @ w2_t + b2) @ w3_t + b3) via one fused Pallas kernel.

    w2_t: [D0, D1]  (already transposed from torch's [D1, D0])
    w3_t: [D1, D2]  (already transposed from torch's [D2, D1])
    """
    B, D0 = x.shape
    D1 = w2_t.shape[1]
    D2 = w3_t.shape[1]
    dtype = x.dtype

    # Lane axis padded to 128; batch tile is a sublane multiple of 8.
    d0p = _round_up(D0, 128)
    d1p = _round_up(D1, 128)
    d2p = _round_up(D2, 128)                 # lane-dense output even when D2 == 1
    tile_b = 128 if B >= 128 else _round_up(B, 8)
    bp = _round_up(B, tile_b)

    xp = jnp.zeros((bp, d0p), dtype).at[:B, :D0].set(x)
    w2p = jnp.zeros((d0p, d1p), dtype).at[:D0, :D1].set(w2_t.astype(dtype))
    b2p = jnp.zeros((1, d1p), jnp.float32).at[0, :D1].set(b2.astype(jnp.float32))
    w3p = jnp.zeros((d1p, d2p), dtype).at[:D1, :D2].set(w3_t.astype(dtype))
    b3p = jnp.zeros((1, d2p), jnp.float32).at[0, :D2].set(b3.astype(jnp.float32))

    grid = (bp // tile_b,)
    out = pl.pallas_call(
        _mlp_head_kernel,
        out_shape=jax.ShapeDtypeStruct((bp, d2p), dtype),
        grid_spec=pltpu.PrefetchScalarGridSpec(
            num_scalar_prefetch=0,
            grid=grid,
            in_specs=[
                # Activation tile: a new block per batch grid step.
                pl.BlockSpec((tile_b, d0p), lambda i: (i, 0)),
                # Weights / biases: constant index_map -> VMEM-resident, DMA'd once.
                pl.BlockSpec((d0p, d1p), lambda i: (0, 0)),
                pl.BlockSpec((1, d1p), lambda i: (0, 0)),
                pl.BlockSpec((d1p, d2p), lambda i: (0, 0)),
                pl.BlockSpec((1, d2p), lambda i: (0, 0)),
            ],
            out_specs=pl.BlockSpec((tile_b, d2p), lambda i: (i, 0)),
        ),
        compiler_params=pltpu.CompilerParams(
            dimension_semantics=("parallel",),
            vmem_limit_bytes=48 * 1024 * 1024,   # headroom under v7x's 64 MiB VMEM
        ),
    )(xp, w2p, b2p, w3p, b3p)

    return out[:B, :D2]


# ---------------------------------------------------------------------------
# Full forward: JAX port of BaseLearner.forward (inference)
# ---------------------------------------------------------------------------
def base_learner_forward(params, onehot_i, onehot_x, multihot_list, ctns):
    lookup_table, w2, b2, w3, b3 = params
    emb_dim = lookup_table.shape[1]

    fields = []
    if onehot_i.size > 0:
        oh = jnp.take(lookup_table, onehot_i.reshape(-1), axis=0)
        oh = oh.reshape(onehot_i.shape + (emb_dim,)) * onehot_x[..., None]
        fields.append(oh.reshape(oh.shape[0], -1))
    for multihot_i, multihot_x in multihot_list:
        mh = jnp.take(lookup_table, multihot_i.reshape(-1), axis=0)
        mh = mh.reshape(multihot_i.shape + (emb_dim,)) * multihot_x[..., None]
        fields.append(mh.sum(axis=1))
    x = jnp.concatenate(fields + [ctns], axis=1)

    # TODO(synk): F.dropout (stochastic, training-mode) implemented as identity
    # (inference path); an in-kernel pltpu.prng_* mask could supply training mode.
    # TODO(synk): the gather/weight/concat glue above could be folded into the
    # kernel via PrefetchScalarGridSpec + row gather to halve HBM traffic on the
    # concatenated activation.

    # Pre-transpose torch [out, in] weights to [in, out] once, outside the kernel.
    out = _mlp_head(x, w2.T, b2, w3.T, b3)
    return out.squeeze()


def _reference_forward(params, onehot_i, onehot_x, multihot_list, ctns):
    """Pure-JAX reference for correctness checking."""
    lookup_table, w2, b2, w3, b3 = params
    emb_dim = lookup_table.shape[1]
    fields = []
    if onehot_i.size > 0:
        oh = jnp.take(lookup_table, onehot_i.reshape(-1), axis=0)
        oh = oh.reshape(onehot_i.shape + (emb_dim,)) * onehot_x[..., None]
        fields.append(oh.reshape(oh.shape[0], -1))
    for mi, mx in multihot_list:
        mh = jnp.take(lookup_table, mi.reshape(-1), axis=0)
        mh = mh.reshape(mi.shape + (emb_dim,)) * mx[..., None]
        fields.append(mh.sum(axis=1))
    x = jnp.concatenate(fields + [ctns], axis=1)
    h = jnp.maximum(x @ w2.T + b2, 0.0)
    z = h @ w3.T + b3
    return jax.nn.sigmoid(z).squeeze()


if __name__ == "__main__":
    # Small shapes consistent with the module's config.
    batch = 16
    num_embeddings, embedding_dim = 32, 8
    onehot_fieldnum = 3
    multihot_fieldnum, maxhotnum = 2, 4
    continuous_fieldnum = 5
    dim0 = (onehot_fieldnum + multihot_fieldnum) * embedding_dim + continuous_fieldnum  # 45
    dim1, dim2 = 32, 1

    key = jax.random.PRNGKey(0)
    ks = jax.random.split(key, 12)

    lookup_table = jax.random.normal(ks[0], (num_embeddings, embedding_dim), jnp.float32)
    w2 = 0.1 * jax.random.normal(ks[1], (dim1, dim0), jnp.float32)   # torch [out, in]
    b2 = 0.1 * jax.random.normal(ks[2], (dim1,), jnp.float32)
    w3 = 0.1 * jax.random.normal(ks[3], (dim2, dim1), jnp.float32)   # torch [out, in]
    b3 = 0.1 * jax.random.normal(ks[4], (dim2,), jnp.float32)
    params = (lookup_table, w2, b2, w3, b3)

    onehot_i = jax.random.randint(ks[5], (batch, onehot_fieldnum), 0, num_embeddings)
    onehot_x = (jax.random.uniform(ks[6], (batch, onehot_fieldnum)) > 0.5).astype(jnp.float32)
    multihot_list = [
        (jax.random.randint(ks[7], (batch, maxhotnum), 0, num_embeddings),
         (jax.random.uniform(ks[8], (batch, maxhotnum)) > 0.5).astype(jnp.float32)),
        (jax.random.randint(ks[9], (batch, maxhotnum), 0, num_embeddings),
         (jax.random.uniform(ks[10], (batch, maxhotnum)) > 0.5).astype(jnp.float32)),
    ]
    ctns = jax.random.normal(ks[11], (batch, continuous_fieldnum), jnp.float32)

    out = jax.jit(base_learner_forward)(params, onehot_i, onehot_x, multihot_list, ctns)
    out = jax.block_until_ready(out)

    ref = _reference_forward(params, onehot_i, onehot_x, multihot_list, ctns)
    assert out.shape == ref.shape == (batch,), (out.shape, ref.shape)
    assert jnp.allclose(out, ref, atol=1e-2, rtol=1e-2), (out, ref)

    print("KERNEL_OK")
</pallas_src>

<mosaic_0001>
module attributes {stable_mosaic.version = 11 : i64} {
  func.func @_mlp_head_kernel(%arg0: i32, %arg1: memref<16x128xf32, #tpu.memory_space<vmem>>, %arg2: memref<128x128xf32, #tpu.memory_space<vmem>>, %arg3: memref<1x128xf32, #tpu.memory_space<vmem>>, %arg4: memref<128x128xf32, #tpu.memory_space<vmem>>, %arg5: memref<1x128xf32, #tpu.memory_space<vmem>>, %arg6: memref<16x128xf32, #tpu.memory_space<vmem>>) attributes {dimension_semantics = [#tpu.dimension_semantics<parallel>], iteration_bounds = array<i64: 1>, scalar_prefetch = 0 : i64, scratch_operands = 0 : i64, tpu.core_type = #tpu.core_type<tc>, window_params = [{transform_indices = @transform_0, window_bounds = array<i64: 16, 128>}, {pipeline_mode = #tpu.pipeline_mode<synchronous>, transform_indices = @transform_1, window_bounds = array<i64: 128, 128>}, {pipeline_mode = #tpu.pipeline_mode<synchronous>, transform_indices = @transform_2, window_bounds = array<i64: 1, 128>}, {pipeline_mode = #tpu.pipeline_mode<synchronous>, transform_indices = @transform_3, window_bounds = array<i64: 128, 128>}, {pipeline_mode = #tpu.pipeline_mode<synchronous>, transform_indices = @transform_4, window_bounds = array<i64: 1, 128>}, {transform_indices = @transform_5, window_bounds = array<i64: 16, 128>}]} {
    %c0 = arith.constant 0 : index
    %c0_0 = arith.constant 0 : index
    %0 = vector.load %arg1[%c0, %c0_0] : memref<16x128xf32, #tpu.memory_space<vmem>>, vector<16x128xf32>
    %c0_1 = arith.constant 0 : index
    %c0_2 = arith.constant 0 : index
    %1 = vector.load %arg2[%c0_1, %c0_2] : memref<128x128xf32, #tpu.memory_space<vmem>>, vector<128x128xf32>
    %cst = arith.constant dense<0.000000e+00> : vector<16x128xf32>
    %2 = tpu.matmul %0, %1, %cst {dimension_numbers = #tpu.dot_dimension_numbers<[1], [0], [0], [1], [0, 0, 1, 1], [], []>} : vector<16x128xf32>, vector<128x128xf32>, vector<16x128xf32> -> vector<16x128xf32>
    %c0_3 = arith.constant 0 : index
    %c0_4 = arith.constant 0 : index
    %3 = vector.load %arg3[%c0_3, %c0_4] : memref<1x128xf32, #tpu.memory_space<vmem>>, vector<1x128xf32>
    %4 = vector.broadcast %3 : vector<1x128xf32> to vector<16x128xf32>
    %5 = arith.addf %2, %4 : vector<16x128xf32>
    %cst_5 = arith.constant 0.000000e+00 : f32
    %6 = vector.broadcast %cst_5 : f32 to vector<16x128xf32>
    %7 = arith.maximumf %5, %6 : vector<16x128xf32>
    %c0_6 = arith.constant 0 : index
    %c0_7 = arith.constant 0 : index
    %8 = vector.load %arg4[%c0_6, %c0_7] : memref<128x128xf32, #tpu.memory_space<vmem>>, vector<128x128xf32>
    %cst_8 = arith.constant dense<0.000000e+00> : vector<16x128xf32>
    %9 = tpu.matmul %7, %8, %cst_8 {dimension_numbers = #tpu.dot_dimension_numbers<[1], [0], [0], [1], [0, 0, 1, 1], [], []>} : vector<16x128xf32>, vector<128x128xf32>, vector<16x128xf32> -> vector<16x128xf32>
    %c0_9 = arith.constant 0 : index
    %c0_10 = arith.constant 0 : index
    %10 = vector.load %arg5[%c0_9, %c0_10] : memref<1x128xf32, #tpu.memory_space<vmem>>, vector<1x128xf32>
    %11 = vector.broadcast %10 : vector<1x128xf32> to vector<16x128xf32>
    %12 = arith.addf %9, %11 : vector<16x128xf32>
    %cst_11 = arith.constant 0.000000e+00 : f32
    %13 = vector.broadcast %cst_11 : f32 to vector<16x128xf32>
    %14 = arith.subf %13, %12 : vector<16x128xf32>
    %15 = math.exp %14 : vector<16x128xf32>
    %cst_12 = arith.constant 1.000000e+00 : f32
    %16 = vector.broadcast %cst_12 : f32 to vector<16x128xf32>
    %17 = arith.addf %16, %15 : vector<16x128xf32>
    %18 = tpu.reciprocal %17 {approx = true} : vector<16x128xf32> -> vector<16x128xf32>
    %c0_13 = arith.constant 0 : index
    %c0_14 = arith.constant 0 : index
    %19 = vector.load %arg6[%c0_13, %c0_14] : memref<16x128xf32, #tpu.memory_space<vmem>>, vector<16x128xf32>
    tpu.vector_store %arg6[%c0_13, %c0_14], %18 {strides = array<i32>} : memref<16x128xf32, #tpu.memory_space<vmem>>, vector<16x128xf32>,
    return
  }
  func.func @transform_0(%arg0: i32) -> (i32, i32) {
    %c0_i32 = arith.constant 0 : i32
    %c0_i32_0 = arith.constant 0 : i32
    return %arg0, %c0_i32 : i32, i32
  }
  func.func @transform_1(%arg0: i32) -> (i32, i32) {
    %c0_i32 = arith.constant 0 : i32
    %c0_i32_0 = arith.constant 0 : i32
    %c0_i32_1 = arith.constant 0 : i32
    return %c0_i32, %c0_i32_0 : i32, i32
  }
  func.func @transform_2(%arg0: i32) -> (i32, i32) {
    %c0_i32 = arith.constant 0 : i32
    %c0_i32_0 = arith.constant 0 : i32
    %c0_i32_1 = arith.constant 0 : i32
    return %c0_i32, %c0_i32_0 : i32, i32
  }
  func.func @transform_3(%arg0: i32) -> (i32, i32) {
    %c0_i32 = arith.constant 0 : i32
    %c0_i32_0 = arith.constant 0 : i32
    %c0_i32_1 = arith.constant 0 : i32
    return %c0_i32, %c0_i32_0 : i32, i32
  }
  func.func @transform_4(%arg0: i32) -> (i32, i32) {
    %c0_i32 = arith.constant 0 : i32
    %c0_i32_0 = arith.constant 0 : i32
    %c0_i32_1 = arith.constant 0 : i32
    return %c0_i32, %c0_i32_0 : i32, i32
  }
  func.func @transform_5(%arg0: i32) -> (i32, i32) {
    %c0_i32 = arith.constant 0 : i32
    %c0_i32_0 = arith.constant 0 : i32
    return %arg0, %c0_i32 : i32, i32
  }
}

</mosaic_0001>

<llo_original>
// kernel: base_learner_forward.1
$region0: #{base_learner_forward.1}
  #allocation0 [shape = 'u32[]', space=smem, size = 0x4, offset = 0x4, fixed_abs, tag = 'smem constant byte address 0x4 - core index']
  #allocation1 [shape = 'u32[144,128]{1,0:T(1,128)}', space=vmem, size = 0x12000, scoped, tag = 'internal scratch']
  %s0 = inlined_call_operand.vmem [shape: f32[16,128], index: 0, kind: input, shape index: {}]
  %s1 = inlined_call_operand.vmem [shape: f32[128,128], index: 1, kind: input, shape index: {}]
  %s2 = inlined_call_operand.vmem [shape: f32[1,128], index: 2, kind: input, shape index: {}]
  %s3 = inlined_call_operand.vmem [shape: f32[128,128], index: 3, kind: input, shape index: {}]
  %s4 = inlined_call_operand.vmem [shape: f32[1,128], index: 4, kind: input, shape index: {}]
  %s5 = inlined_call_operand.vmem [shape: f32[16,128], index: 5, kind: output, shape index: {}]
  %s6 = sld [smem:[#allocation0]]
  $region30: #{base_learner_forward.1} parent=0
    _
  %s8 = ssub.s32 1, %s6
  %s9 = scalar_select 0, %s8, %s6
  // Predicated region
  $region2: #{base_learner_forward.1} parent=0 // pred_check
    _
  $region3: #{base_learner_forward.1} parent=0 // pred_check_branch
    %11 = sbr.rel (0) target = $region5
  $region4: #{base_learner_forward.1} parent=0 // pred_region
    _
  $region5: #{base_learner_forward.1} parent=0 // pred_fallthru
    _
  // Predicated region
  $region6: #{base_learner_forward.1} parent=0 // pred_check
    _
  $region7: #{base_learner_forward.1} parent=0 // pred_check_branch
    %13 = sbr.rel (0) target = $region9
  $region8: #{base_learner_forward.1} parent=0 // pred_region
    _
  $region9: #{base_learner_forward.1} parent=0 // pred_fallthru
    _
  // Predicated region
  $region10: #{base_learner_forward.1} parent=0 // pred_check
    _
  $region11: #{base_learner_forward.1} parent=0 // pred_check_branch
    %15 = sbr.rel (0) target = $region13
  $region12: #{base_learner_forward.1} parent=0 // pred_region
    _
  $region13: #{base_learner_forward.1} parent=0 // pred_fallthru
    _
  // Predicated region
  $region14: #{base_learner_forward.1} parent=0 // pred_check
    _
  $region15: #{base_learner_forward.1} parent=0 // pred_check_branch
    %17 = sbr.rel (0) target = $region17
  $region16: #{base_learner_forward.1} parent=0 // pred_region
    _
  $region17: #{base_learner_forward.1} parent=0 // pred_fallthru
    _
  // Predicated region
  $region18: #{base_learner_forward.1} parent=0 // pred_check
    _
  $region19: #{base_learner_forward.1} parent=0 // pred_check_branch
    %19 = sbr.rel (0) target = $region21
  $region20: #{base_learner_forward.1} parent=0 // pred_region
    _
  $region21: #{base_learner_forward.1} parent=0 // pred_fallthru
    _
  %v20 = vld [vmem:[%s0] sm:$0xff]
  %v21 = vld [vmem:[%s0 + $0x8] sm:$0xff]
  %v22 = vld [vmem:[%s1] sm:$0xff]
  %v23 = vld [vmem:[%s1 + $0x8] sm:$0xff]
  %v24 = vld [vmem:[%s1 + $0x10] sm:$0xff]
  %v25 = vld [vmem:[%s1 + $0x18] sm:$0xff]
  %v26 = vld [vmem:[%s1 + $0x20] sm:$0xff]
  %v27 = vld [vmem:[%s1 + $0x28] sm:$0xff]
  %v28 = vld [vmem:[%s1 + $0x30] sm:$0xff]
  %v29 = vld [vmem:[%s1 + $0x38] sm:$0xff]
  %v30 = vld [vmem:[%s1 + $0x40] sm:$0xff]
  %v31 = vld [vmem:[%s1 + $0x48] sm:$0xff]
  %v32 = vld [vmem:[%s1 + $0x50] sm:$0xff]
  %v33 = vld [vmem:[%s1 + $0x58] sm:$0xff]
  %v34 = vld [vmem:[%s1 + $0x60] sm:$0xff]
  %v35 = vld [vmem:[%s1 + $0x68] sm:$0xff]
  %v36 = vld [vmem:[%s1 + $0x70] sm:$0xff]
  %v37 = vld [vmem:[%s1 + $0x78] sm:$0xff]
  %v38 = vld [vmem:[%s2] sm:$0x1]
  %v40 = vlaneseq
  %v41 = vshrl.u32 %v40, 7
  %v42 = vsub.s32 0, %v41
  %v43 = vrot.slane %v38, %v42
  %45 = vmatprep.subr.mxu0 0.0
  %46 = vmatpush1.msra.mxu0 %v22
  %47 = vmatprep.subr.mxu0 0.0
  %48 = vmatpush1.msra.mxu0 %v23
  %49 = vmatprep.subr.mxu0 0.0
  %50 = vmatpush1.msra.mxu0 %v24
  %51 = vmatprep.subr.mxu0 0.0
  %52 = vmatpush1.msra.mxu0 %v25
  %53 = vmatprep.subr.mxu0 0.0
  %54 = vmatpush1.msra.mxu0 %v26
  %55 = vmatprep.subr.mxu0 0.0
  %56 = vmatpush1.msra.mxu0 %v27
  %57 = vmatprep.subr.mxu0 0.0
  %58 = vmatpush1.msra.mxu0 %v28
  %59 = vmatprep.subr.mxu0 0.0
  %60 = vmatpush1.msra.mxu0 %v29
  %61 = vmatprep.subr.mxu0 0.0
  %62 = vmatpush1.msra.mxu0 %v30
  %63 = vmatprep.subr.mxu0 0.0
  %64 = vmatpush1.msra.mxu0 %v31
  %65 = vmatprep.subr.mxu0 0.0
  %66 = vmatpush1.msra.mxu0 %v32
  %67 = vmatprep.subr.mxu0 0.0
  %68 = vmatpush1.msra.mxu0 %v33
  %69 = vmatprep.subr.mxu0 0.0
  %70 = vmatpush1.msra.mxu0 %v34
  %71 = vmatprep.subr.mxu0 0.0
  %72 = vmatpush1.msra.mxu0 %v35
  %73 = vmatprep.subr.mxu0 0.0
  %74 = vmatpush1.msra.mxu0 %v36
  %75 = vmatprep.subr.mxu0 0.0
  %76 = vmatpush1.msra.mxu0 %v37
  %77 = vmatprep.subr.mxu0 0.0
  %78 = vmatpush1.msra.mxu0 0.0
  %79 = vmatprep.subr.mxu0 0.0
  %80 = vmatpush1.msra.mxu0 0.0
  %81 = vmatprep.subr.mxu0 0.0
  %82 = vmatpush1.msra.mxu0 0.0
  %83 = vmatprep.subr.mxu0 0.0
  %84 = vmatpush1.msra.mxu0 0.0
  %85 = vmatprep.subr.mxu0 0.0
  %86 = vmatpush1.msra.mxu0 0.0
  %87 = vmatprep.subr.mxu0 0.0
  %88 = vmatpush1.msra.mxu0 0.0
  %89 = vmatprep.subr.mxu0 0.0
  %90 = vmatpush1.msra.mxu0 0.0
  %91 = vmatprep.subr.mxu0 0.0
  %92 = vmatpush1.msra.mxu0 0.0
  %93 = vmatprep.subr.mxu0 0.0
  %94 = vmatpush1.msra.mxu0 0.0
  %95 = vmatprep.subr.mxu0 0.0
  %96 = vmatpush1.msra.mxu0 0.0
  %97 = vmatprep.subr.mxu0 0.0
  %98 = vmatpush1.msra.mxu0 0.0
  %99 = vmatprep.subr.mxu0 0.0
  %100 = vmatpush1.msra.mxu0 0.0
  %101 = vmatprep.subr.mxu0 0.0
  %102 = vmatpush1.msra.mxu0 0.0
  %103 = vmatprep.subr.mxu0 0.0
  %104 = vmatpush1.msra.mxu0 0.0
  %105 = vmatprep.subr.mxu0 0.0
  %106 = vmatpush1.msra.mxu0 0.0
  %107 = vmatprep.subr.mxu0 0.0
  %108 = vmatpush1.msra.mxu0 0.0
  %109 = vmatprep.mubr.f32.mxu0 0.0
  %110 = vmatmul.mubr.f32.gmra.mrb[0].mxu0 %v20
  %v111 = vpop.f32.mrb[0].mxu0
  %v112 = vadd.f32 %v43, %v111
  %v113 = vpop.f32.mrb[0].mxu0
  %114 = vmatprep.mubr.f32.mxu0 0.0
  %115 = vmatmul.mubr.f32.gmra.mrb[0].mxu0 %v21
  %v116 = vpop.f32.mrb[0].mxu0
  %v117 = vadd.f32 %v43, %v116
  %v118 = vpop.f32.mrb[0].mxu0
  %119 = vdwg.mxu0
  %v120 = vmax.f32 %v112, 0.0
  %v121 = vmax.f32 %v117, 0.0
  %v122 = vld [vmem:[%s3] sm:$0xff]
  %v123 = vld [vmem:[%s3 + $0x8] sm:$0xff]
  %v124 = vld [vmem:[%s3 + $0x10] sm:$0xff]
  %v125 = vld [vmem:[%s3 + $0x18] sm:$0xff]
  %v126 = vld [vmem:[%s3 + $0x20] sm:$0xff]
  %v127 = vld [vmem:[%s3 + $0x28] sm:$0xff]
  %v128 = vld [vmem:[%s3 + $0x30] sm:$0xff]
  %v129 = vld [vmem:[%s3 + $0x38] sm:$0xff]
  %v130 = vld [vmem:[%s3 + $0x40] sm:$0xff]
  %v131 = vld [vmem:[%s3 + $0x48] sm:$0xff]
  %v132 = vld [vmem:[%s3 + $0x50] sm:$0xff]
  %v133 = vld [vmem:[%s3 + $0x58] sm:$0xff]
  %v134 = vld [vmem:[%s3 + $0x60] sm:$0xff]
  %v135 = vld [vmem:[%s3 + $0x68] sm:$0xff]
  %v136 = vld [vmem:[%s3 + $0x70] sm:$0xff]
  %v137 = vld [vmem:[%s3 + $0x78] sm:$0xff]
  %v138 = vld [vmem:[%s4] sm:$0x1]
  %v140 = vlaneseq
  %v141 = vshrl.u32 %v140, 7
  %v142 = vsub.s32 0, %v141
  %v143 = vrot.slane %v138, %v142
  %145 = vmatprep.subr.mxu0 0.0
  %146 = vmatpush1.msra.mxu0 %v122
  %147 = vmatprep.subr.mxu0 0.0
  %148 = vmatpush1.msra.mxu0 %v123
  %149 = vmatprep.subr.mxu0 0.0
  %150 = vmatpush1.msra.mxu0 %v124
  %151 = vmatprep.subr.mxu0 0.0
  %152 = vmatpush1.msra.mxu0 %v125
  %153 = vmatprep.subr.mxu0 0.0
  %154 = vmatpush1.msra.mxu0 %v126
  %155 = vmatprep.subr.mxu0 0.0
  %156 = vmatpush1.msra.mxu0 %v127
  %157 = vmatprep.subr.mxu0 0.0
  %158 = vmatpush1.msra.mxu0 %v128
  %159 = vmatprep.subr.mxu0 0.0
  %160 = vmatpush1.msra.mxu0 %v129
  %161 = vmatprep.subr.mxu0 0.0
  %162 = vmatpush1.msra.mxu0 %v130
  %163 = vmatprep.subr.mxu0 0.0
  %164 = vmatpush1.msra.mxu0 %v131
  %165 = vmatprep.subr.mxu0 0.0
  %166 = vmatpush1.msra.mxu0 %v132
  %167 = vmatprep.subr.mxu0 0.0
  %168 = vmatpush1.msra.mxu0 %v133
  %169 = vmatprep.subr.mxu0 0.0
  %170 = vmatpush1.msra.mxu0 %v134
  %171 = vmatprep.subr.mxu0 0.0
  %172 = vmatpush1.msra.mxu0 %v135
  %173 = vmatprep.subr.mxu0 0.0
  %174 = vmatpush1.msra.mxu0 %v136
  %175 = vmatprep.subr.mxu0 0.0
  %176 = vmatpush1.msra.mxu0 %v137
  %177 = vmatprep.subr.mxu0 0.0
  %178 = vmatpush1.msra.mxu0 0.0
  %179 = vmatprep.subr.mxu0 0.0
  %180 = vmatpush1.msra.mxu0 0.0
  %181 = vmatprep.subr.mxu0 0.0
  %182 = vmatpush1.msra.mxu0 0.0
  %183 = vmatprep.subr.mxu0 0.0
  %184 = vmatpush1.msra.mxu0 0.0
  %185 = vmatprep.subr.mxu0 0.0
  %186 = vmatpush1.msra.mxu0 0.0
  %187 = vmatprep.subr.mxu0 0.0
  %188 = vmatpush1.msra.mxu0 0.0
  %189 = vmatprep.subr.mxu0 0.0
  %190 = vmatpush1.msra.mxu0 0.0
  %191 = vmatprep.subr.mxu0 0.0
  %192 = vmatpush1.msra.mxu0 0.0
  %193 = vmatprep.subr.mxu0 0.0
  %194 = vmatpush1.msra.mxu0 0.0
  %195 = vmatprep.subr.mxu0 0.0
  %196 = vmatpush1.msra.mxu0 0.0
  %197 = vmatprep.subr.mxu0 0.0
  %198 = vmatpush1.msra.mxu0 0.0
  %199 = vmatprep.subr.mxu0 0.0
  %200 = vmatpush1.msra.mxu0 0.0
  %201 = vmatprep.subr.mxu0 0.0
  %202 = vmatpush1.msra.mxu0 0.0
  %203 = vmatprep.subr.mxu0 0.0
  %204 = vmatpush1.msra.mxu0 0.0
  %205 = vmatprep.subr.mxu0 0.0
  %206 = vmatpush1.msra.mxu0 0.0
  %207 = vmatprep.subr.mxu0 0.0
  %208 = vmatpush1.msra.mxu0 0.0
  %209 = vmatprep.mubr.f32.mxu0 0.0
  %210 = vmatmul.mubr.f32.gmra.mrb[0].mxu0 %v120
  %v211 = vpop.f32.mrb[0].mxu0
  %v212 = vadd.f32 %v143, %v211
  %v213 = vpop.f32.mrb[0].mxu0
  %214 = vmatprep.mubr.f32.mxu0 0.0
  %215 = vmatmul.mubr.f32.gmra.mrb[0].mxu0 %v121
  %v216 = vpop.f32.mrb[0].mxu0
  %v217 = vadd.f32 %v143, %v216
  %v218 = vpop.f32.mrb[0].mxu0
  %219 = vdwg.mxu0
  %v220 = vsub.f32 0.0, %v212
  %v221 = vsub.f32 0.0, %v217
  %v222 = vmul.f32 %v220, 1.442695
  %v223 = vpow.pop %v222
  %v224 = vmul.f32 %v221, 1.442695
  %v225 = vpow.pop %v224
  %v226 = vadd.f32 %v223, 1.0
  %v227 = vadd.f32 %v225, 1.0
  %v228 = vrcp.pop %v226
  %v229 = vrcp.pop %v227
  %230 = vst [vmem:[%s5] sm:$0xff] %v228
  %231 = vst [vmem:[%s5 + $0x8] sm:$0xff] %v229
  // Predicated region
  $region22: #{base_learner_forward.1} parent=0 // pred_check
    _
  $region23: #{base_learner_forward.1} parent=0 // pred_check_branch
    %233 = sbr.rel (0) target = $region25
  $region24: #{base_learner_forward.1} parent=0 // pred_region
    _
  $region25: #{base_learner_forward.1} parent=0 // pred_fallthru
    _
  // Predicated region
  $region26: #{base_learner_forward.1} parent=0 // pred_check
    _
  $region27: #{base_learner_forward.1} parent=0 // pred_check_branch
    %235 = sbr.rel (0) target = $region29
  $region28: #{base_learner_forward.1} parent=0 // pred_region
    _
  $region29: #{base_learner_forward.1} parent=0 // pred_fallthru
    _

</llo_original>
